<compile_context>
chip_gen: v5e
topology: v5e:2x2
jax: 0.10.0
libtpu: 0.0.40
codegen_flags: <defaults>
</compile_context>

<pallas_src>
import functools

import numpy as np
import jax
import jax.numpy as jnp
from jax import lax
from jax.experimental import pallas as pl
from jax.experimental.pallas import tpu as pltpu

NEG_INF = -1.0e20
COL_SENTINEL = 1.0e9          # > any realistic vocab column id (kept in f32)


def _round_up(x, m):
    return ((x + m - 1) // m) * m


def _plan_tiling(hidden_dim, vocab, rows_hint):
    """Generation-aware vocab tiling: biggest weight tile whose double-buffered
    bf16 stream (plus the small resident row-tile buffers) fits a VMEM budget
    derived from the actual chip (v5e/v6e 128 MiB, v7x 64 MiB)."""
    try:
        info = pltpu.get_tpu_info()
        vmem_cap = int(getattr(info, "vmem_capacity_bytes", 0)) or (64 << 20)
    except Exception:
        vmem_cap = 64 << 20
    budget = min(int(vmem_cap * 0.65), 80 << 20)

    row_tile = min(_round_up(max(rows_hint, 8), 8), 256)
    # resident / non-weight VMEM: hidden (dbl-buffered bf16), candidate output
    # blocks, running top-k + LSE scratch, plus slack.
    reserve = (2 * row_tile * hidden_dim * 2
               + 4 * row_tile * 128 * 8
               + row_tile * (128 * 8 + 16)
               + (2 << 20))
    w_budget = max(budget - reserve, 4 * hidden_dim * 128)
    cap_v = max(128, min(8192, (w_budget // (4 * hidden_dim)) // 128 * 128))

    # v7x: 2 TensorCores -> split the vocab (never the rows) into 2 parallel
    # chunks; harmless (sequential) on single-core chips.
    num_chunks = 2 if pl.cdiv(vocab, 128) >= 2 else 1
    chunk = pl.cdiv(vocab, num_chunks)
    tiles_per_chunk = pl.cdiv(chunk, cap_v)
    tile_v = _round_up(pl.cdiv(chunk, tiles_per_chunk), 128)

    vmem_limit = int(min(vmem_cap, budget + (8 << 20)))
    return tile_v, num_chunks, tiles_per_chunk, vmem_limit


# ----------------------------------------------------------------------------
# Pallas kernel. Grid = (row_tiles, vocab_chunks, tiles_per_chunk).
# Per (r, c, j):
#   logits = hidden @ W_tile (bf16 in, f32 acc)
#   online LSE over the chunk's vocab tiles (scratch m/s)
#   scores = logits + prev_beam_score, EOS column overwritten with -1e20 on
#            min-length steps (reference semantics), padded cols -> -inf
#   running per-row top-beam_size (value, column) merge in VMEM scratch
#   at the last tile of the chunk: emit (rows,128) candidate slabs + chunk LSE
# ----------------------------------------------------------------------------
def _beam_topk_kernel(flag_ref, hid_ref, w_ref, prev_ref,
                      vals_ref, ids_ref, lse_ref,
                      m_sc, s_sc, rv_sc, ri_sc,
                      *, beam_size, end_token_id, tile_v, tiles_per_chunk,
                      vocab, vocab_padded):
    c = pl.program_id(1)
    j = pl.program_id(2)
    nv = pl.num_programs(2)

    @pl.when(j == 0)
    def _init():
        m_sc[...] = jnp.full_like(m_sc, NEG_INF)
        s_sc[...] = jnp.zeros_like(s_sc)
        rv_sc[...] = jnp.full_like(rv_sc, -jnp.inf)
        ri_sc[...] = jnp.full_like(ri_sc, COL_SENTINEL)

    # MXU: bf16 weights streamed once per decode step, f32 accumulation.
    logits = jnp.dot(hid_ref[...], w_ref[...],
                     preferred_element_type=jnp.float32)

    tile_start = (c * tiles_per_chunk + j) * tile_v
    colf = (tile_start
            + lax.broadcasted_iota(jnp.int32, logits.shape, 1)).astype(jnp.float32)
    if vocab_padded != vocab:
        logits = jnp.where(colf < vocab, logits, jnp.float32(NEG_INF))

    # Online log-sum-exp over this chunk (pre-mask logits == log_softmax
    # denominator); chunk LSEs are combined with logaddexp in the wrapper.
    tile_max = jnp.max(logits, axis=-1, keepdims=True)
    m_new = jnp.maximum(m_sc[...], tile_max)
    s_sc[...] = (s_sc[...] * jnp.exp(m_sc[...] - m_new)
                 + jnp.sum(jnp.exp(logits - m_new), axis=-1, keepdims=True))
    m_sc[...] = m_new

    # Unnormalized beam scores; the per-row -LSE is a constant within-row
    # shift, applied later to the beam_size survivors only.
    scores = logits + prev_ref[...]
    # enforce_min_length: reference overwrites the combined score with -1e20.
    scores = jnp.where(
        jnp.logical_and(flag_ref[0] > 0, colf == jnp.float32(end_token_id)),
        jnp.float32(NEG_INF), scores)
    if vocab_padded != vocab:
        scores = jnp.where(colf < vocab, scores, -jnp.inf)

    # Fused running per-row top-beam_size over the vocab sweep: concat the
    # running candidates (128 lanes) with this tile and peel off beam_size
    # maxima (smallest-column tie-break; picked entries knocked out via the
    # column sentinel so they can never be re-selected).
    work = jnp.concatenate([rv_sc[...], scores], axis=-1)
    wcol = jnp.concatenate([ri_sc[...], colf], axis=-1)
    lane = lax.broadcasted_iota(jnp.int32, rv_sc.shape, 1)
    new_v = jnp.full_like(rv_sc, -jnp.inf)
    new_i = jnp.full_like(ri_sc, COL_SENTINEL)
    for b in range(beam_size):
        m = jnp.max(work, axis=-1, keepdims=True)
        hit = work >= m
        cid = jnp.min(jnp.where(hit, wcol, COL_SENTINEL), axis=-1, keepdims=True)
        new_v = jnp.where(lane == b, m, new_v)
        new_i = jnp.where(lane == b, cid, new_i)
        sel = wcol == cid
        work = jnp.where(sel, -jnp.inf, work)
        wcol = jnp.where(sel, COL_SENTINEL, wcol)
    rv_sc[...] = new_v
    ri_sc[...] = new_i

    @pl.when(j == nv - 1)
    def _emit():
        vals_ref[...] = rv_sc[...]
        ids_ref[...] = ri_sc[...].astype(jnp.int32)
        lse_ref[0] = m_sc[...] + jnp.log(s_sc[...])


@functools.partial(
    jax.jit,
    static_argnames=("end_token_id", "vocab", "beam_size", "batch", "tile_v",
                     "num_chunks", "tiles_per_chunk", "vmem_limit"))
def _device_step(hidden, w_padded, prev_logp, min_len_flag, bad_row_mask,
                 beam_offset, inv_len_penalty, *, end_token_id, vocab,
                 beam_size, batch, tile_v, num_chunks, tiles_per_chunk,
                 vmem_limit):
    rows, hidden_dim = hidden.shape
    vocab_padded = num_chunks * tiles_per_chunk * tile_v

    rows_padded = _round_up(max(rows, 8), 8)
    row_tile = min(rows_padded, 256)           # all beam rows in one tile
    rows_padded = _round_up(rows_padded, row_tile)
    nr = rows_padded // row_tile

    hid = hidden.astype(jnp.bfloat16)          # pre-cast once, outside kernel
    prev = prev_logp.reshape(-1, 1).astype(jnp.float32)
    if rows_padded != rows:
        hid = jnp.pad(hid, ((0, rows_padded - rows), (0, 0)))
        prev = jnp.pad(prev, ((0, rows_padded - rows), (0, 0)))

    kernel = functools.partial(
        _beam_topk_kernel, beam_size=beam_size, end_token_id=end_token_id,
        tile_v=tile_v, tiles_per_chunk=tiles_per_chunk, vocab=vocab,
        vocab_padded=vocab_padded)

    vals, ids, lse = pl.pallas_call(
        kernel,
        grid_spec=pltpu.PrefetchScalarGridSpec(
            num_scalar_prefetch=1,             # min-length flag -> SMEM
            grid=(nr, num_chunks, tiles_per_chunk),
            in_specs=[
                pl.BlockSpec((row_tile, hidden_dim), lambda r, c, j, f: (r, 0)),
                pl.BlockSpec((hidden_dim, tile_v),
                             lambda r, c, j, f: (0, c * tiles_per_chunk + j)),
                pl.BlockSpec((row_tile, 1), lambda r, c, j, f: (r, 0)),
            ],
            out_specs=[
                pl.BlockSpec((row_tile, 128), lambda r, c, j, f: (r, c)),
                pl.BlockSpec((row_tile, 128), lambda r, c, j, f: (r, c)),
                pl.BlockSpec((1, row_tile, 1), lambda r, c, j, f: (c, r, 0)),
            ],
            scratch_shapes=[pltpu.VMEM((row_tile, 1), jnp.float32),
                            pltpu.VMEM((row_tile, 1), jnp.float32),
                            pltpu.VMEM((row_tile, 128), jnp.float32),
                            pltpu.VMEM((row_tile, 128), jnp.float32)],
        ),
        out_shape=(
            jax.ShapeDtypeStruct((rows_padded, num_chunks * 128), jnp.float32),
            jax.ShapeDtypeStruct((rows_padded, num_chunks * 128), jnp.int32),
            jax.ShapeDtypeStruct((num_chunks, rows_padded, 1), jnp.float32),
        ),
        compiler_params=pltpu.CompilerParams(
            dimension_semantics=("parallel", "parallel", "arbitrary"),
            vmem_limit_bytes=vmem_limit),
        cost_estimate=pl.CostEstimate(
            flops=2 * rows_padded * hidden_dim * vocab_padded,
            transcendentals=rows_padded * vocab_padded,
            bytes_accessed=(hidden_dim * vocab_padded * 2
                            + rows_padded * hidden_dim * 2
                            + rows_padded * num_chunks * (128 * 8 + 4))),
    )(min_len_flag, hid, w_padded, prev)

    # Per-chunk candidates -> per-row top-k over the (num_chunks*beam) union.
    vals = vals[:rows].reshape(rows, num_chunks, 128)[:, :, :beam_size]
    ids = ids[:rows].reshape(rows, num_chunks, 128)[:, :, :beam_size]
    vals = vals.reshape(rows, num_chunks * beam_size)
    ids = ids.reshape(rows, num_chunks * beam_size)
    lse = lse[:, :rows, 0]                                     # (chunks, rows)
    lse_row = jnp.logaddexp(lse[0], lse[1]) if num_chunks == 2 else lse[0]

    row_vals, pos = lax.top_k(vals, beam_size)                 # (rows, beam)
    row_ids = jnp.take_along_axis(ids, pos, axis=1)
    row_ids = jnp.minimum(row_ids, vocab - 1)                  # clamp garbage cols
    row_vals = row_vals - lse_row[:, None]                     # deferred log_softmax denom
    row_vals = jnp.where(bad_row_mask[:, None], jnp.float32(NEG_INF), row_vals)

    # Stage 2: batch-level top-k over the beam*beam surviving candidates.
    beam_in_batch = (jnp.arange(rows, dtype=jnp.int32) % beam_size)[:, None]
    flat_ids = row_ids + beam_in_batch * vocab
    cand_vals = row_vals.reshape(batch, beam_size * beam_size)
    cand_ids = flat_ids.reshape(batch, beam_size * beam_size)
    topk_logp, pos2 = lax.top_k(cand_vals, beam_size)
    topk_ids = jnp.take_along_axis(cand_ids, pos2, axis=1)

    topk_scores = topk_logp * inv_len_penalty
    topk_beam_ids = topk_ids // vocab
    topk_token_ids = topk_ids % vocab
    surviving = (topk_beam_ids + beam_offset[:, None]).reshape(-1)
    is_finished = topk_token_ids == end_token_id
    return topk_logp, topk_scores, topk_token_ids, surviving, is_finished


# ----------------------------------------------------------------------------
# Glue (plain JAX / host): tile helper, tiny deterministic encoder/decoder,
# and the beam-search bookkeeping.
# ----------------------------------------------------------------------------
def tile(x, count, dim=0):
    # The torch helper has repeat_interleave semantics along `dim`.
    return jnp.repeat(x, count, axis=dim)


class DummyTokenizer:
    start_token_id = 1
    end_token_id = 2
    pad_token_id = 0


class TinySeq2Seq:
    """Deterministic synthetic encoder/decoder standing in for `model`."""

    def __init__(self, vocab, hidden, key):
        k1, k2, k3, k4 = jax.random.split(key, 4)
        s = 0.05
        self.embed = jax.random.normal(k1, (vocab, hidden), jnp.float32) * s
        self.w_enc = jax.random.normal(k2, (hidden, hidden), jnp.float32) * s
        self.w_dec = jax.random.normal(k3, (hidden, hidden), jnp.float32) * s
        self.w_out = jax.random.normal(k4, (hidden, vocab), jnp.float32) * s

    def encode(self, input_ids):                      # (B, S) -> (B, S, H)
        emb = self.embed[input_ids]
        return jnp.tanh(emb @ self.w_enc)

    def decoder_hidden(self, last_tokens, encoder_hidden_states):
        # TODO(synk): fusing this small projection into the score kernel would
        # keep hidden resident in VMEM and save one launch per step.
        tok = self.embed[last_tokens]                 # (R, H)
        ctx = encoder_hidden_states.mean(axis=1)      # (R, H)
        return jnp.tanh(tok + ctx @ self.w_dec)


class TransformerBeamSearch:
    def __init__(self, model, tokenizer, batch_size, beam_size, min_length,
                 max_length, alpha=0.0, block_repeating_trigram=True):
        assert beam_size <= 64, "beam_size must fit the 128-lane candidate scratch"
        self.model = model
        self.tokenizer = tokenizer
        self.start_token_id = tokenizer.start_token_id
        self.end_token_id = tokenizer.end_token_id
        self.pad_token_id = tokenizer.pad_token_id
        self.batch_size = batch_size
        self.beam_size = beam_size
        self.min_length = min_length
        self.max_length = max_length
        self.block_repeating_trigram = block_repeating_trigram
        self.apply_length_penalty = alpha != 0
        self.alpha = alpha
        self.hypotheses = [[] for _ in range(batch_size)]
        self.batch_offset = np.arange(batch_size, dtype=np.int64)
        self.beam_offset = np.arange(0, batch_size * beam_size, beam_size,
                                     dtype=np.int32)
        self.growing_beam = np.full((batch_size * beam_size, 1),
                                    self.start_token_id, np.int32)
        self.topk_log_probabilities = np.tile(
            np.array([0.0] + [-np.inf] * (beam_size - 1), dtype=np.float32),
            batch_size)
        self.results = {"predictions": [[] for _ in range(batch_size)],
                        "scores": [[] for _ in range(batch_size)]}
        self._step = 0
        self.is_done = False
        self._last_device_out = None

        # Cache the output projection once as a (vocab-padded) bf16 matrix: the
        # kernel is HBM-bandwidth bound on streaming it.
        # TODO(synk): int8 (v5e/v6e) or fp8-e4m3 (v7x) weight quantization with
        # per-column scales would halve the dominant HBM byte stream again.
        hidden_dim, vocab = model.w_out.shape
        assert beam_size <= vocab
        self._vocab = vocab
        (self._tile_v, self._num_chunks, self._tiles_per_chunk,
         self._vmem_limit) = _plan_tiling(hidden_dim, vocab,
                                          batch_size * beam_size)
        vpad = self._num_chunks * self._tiles_per_chunk * self._tile_v
        w_bf16 = model.w_out.astype(jnp.bfloat16)
        if vpad != vocab:
            w_bf16 = jnp.pad(w_bf16, ((0, 0), (0, vpad - vocab)))
        self._w_out_bf16 = w_bf16

    def length_penalty(self):
        return ((5.0 + (self._step + 1)) / 6.0) ** self.alpha

    def _trigram_bad_rows(self, rows):
        # TODO(synk): trigram blocking needs variable-length python token
        # history -> stays host-side; applied as a whole-row NEG_INF mask on
        # the per-row top-k candidates (equivalent to masking the full row).
        bad = np.zeros((rows,), dtype=bool)
        if not self.block_repeating_trigram or self._step + 1 <= 3:
            return bad
        gb = self.growing_beam
        for i in range(min(rows, gb.shape[0])):
            toks = [int(t) for t in gb[i]]
            trig = [(toks[k - 1], toks[k], toks[k + 1])
                    for k in range(1, len(toks) - 1)]
            if len(trig) >= 2 and tuple(trig[-1]) in trig[:-1]:
                bad[i] = True
        return bad

    def step(self, decoder_hidden):
        """Grows the beam by one step; projection + log-softmax + per-row
        top-k run fused inside the Pallas kernel."""
        self._step += 1
        _B = decoder_hidden.shape[0] // self.beam_size
        rows = _B * self.beam_size
        vocab = self._vocab

        min_len_flag = jnp.asarray(
            [1 if self._step < self.min_length else 0], dtype=jnp.int32)
        bad_rows = self._trigram_bad_rows(rows)
        inv_pen = jnp.float32(1.0 / self.length_penalty())

        (topk_logp, topk_scores, topk_token_ids,
         surviving, is_finished) = _device_step(
            decoder_hidden, self._w_out_bf16,
            jnp.asarray(self.topk_log_probabilities, dtype=jnp.float32),
            min_len_flag, jnp.asarray(bad_rows),
            jnp.asarray(self.beam_offset[:_B], dtype=jnp.int32), inv_pen,
            end_token_id=self.end_token_id, vocab=vocab,
            beam_size=self.beam_size, batch=_B, tile_v=self._tile_v,
            num_chunks=self._num_chunks,
            tiles_per_chunk=self._tiles_per_chunk,
            vmem_limit=self._vmem_limit)
        self._last_device_out = (topk_logp, surviving)

        # TODO(synk): single small per-step host fetch (the reference requires
        # per-step finished-beam bookkeeping); batching it every K steps would
        # remove the remaining host round-trip.
        logp_np, scores_np, token_np, surv_np, fin = jax.device_get(
            (topk_logp, topk_scores, topk_token_ids, surviving, is_finished))
        fin = np.array(fin)
        token_np = np.asarray(token_np, dtype=np.int64)
        surv_np = np.asarray(surv_np, dtype=np.int64)
        logp_np = np.asarray(logp_np, dtype=np.float32)
        scores_np = np.asarray(scores_np, dtype=np.float32)

        self.growing_beam = np.concatenate(
            [self.growing_beam[surv_np],
             token_np.reshape(-1, 1).astype(np.int32)], axis=1)

        if self._step + 1 == self.max_length:          # enforce_max_length
            fin[:] = True

        surviving_rows = surv_np
        if fin.any():
            top_fin = fin[:, 0].copy()
            predictions = self.growing_beam.reshape(
                _B, self.beam_size, self.growing_beam.shape[1])
            for i in range(_B):
                if top_fin[i]:
                    fin[i, :] = True
                b = int(self.batch_offset[i])
                for j in np.nonzero(fin[i])[0]:
                    self.hypotheses[b].append(
                        (float(scores_np[i, j]), predictions[i, j, :].copy()))
                if top_fin[i]:
                    best_score, best_pred = sorted(
                        self.hypotheses[b], key=lambda x: x[0], reverse=True)[0]
                    self.results["scores"][b].append(best_score)
                    self.results["predictions"][b].append(best_pred)
            non_finished = np.nonzero(~top_fin)[0]
            if len(non_finished) == 0:
                self.is_done = True
                self.topk_log_probabilities = logp_np.reshape(-1)
                return jnp.asarray(surviving_rows, dtype=jnp.int32)
            logp_np = logp_np[non_finished]
            self.batch_offset = self.batch_offset[non_finished]
            self.growing_beam = predictions[non_finished].reshape(
                -1, predictions.shape[-1])
            surviving_rows = surv_np.reshape(
                _B, self.beam_size)[non_finished].reshape(-1)

        self.topk_log_probabilities = logp_np.reshape(-1)
        return jnp.asarray(surviving_rows, dtype=jnp.int32)

    def forward(self, encoder_input_ids):
        encoder_outputs = self.model.encode(encoder_input_ids)                # (B, S, H)
        encoder_hidden_states = tile(encoder_outputs, self.beam_size, dim=0)  # (B*beam, S, H)
        self.growing_beam = np.full((self.batch_size * self.beam_size, 1),
                                    self.start_token_id, np.int32)
        for _ in range(self.max_length):
            decoder_input = jnp.asarray(self.growing_beam[:, -1])
            hidden = self.model.decoder_hidden(decoder_input, encoder_hidden_states)
            surviving_beams_rows = self.step(hidden)
            if self.is_done:
                break
            encoder_hidden_states = encoder_hidden_states[surviving_beams_rows]
        return self.results


if __name__ == "__main__":
    B, S, H, V = 2, 8, 32, 128
    beam, min_len, max_len = 4, 2, 6

    key = jax.random.PRNGKey(0)
    k_model, k_ids = jax.random.split(key)

    tokenizer = DummyTokenizer()
    model = TinySeq2Seq(V, H, k_model)
    searcher = TransformerBeamSearch(model, tokenizer, batch_size=B, beam_size=beam,
                                     min_length=min_len, max_length=max_len,
                                     alpha=0.0, block_repeating_trigram=True)

    encoder_input_ids = jax.random.randint(k_ids, (B, S), 3, V, dtype=jnp.int32)
    results = searcher.forward(encoder_input_ids)

    if searcher._last_device_out is not None:
        jax.block_until_ready(searcher._last_device_out)
    jax.block_until_ready(searcher._w_out_bf16)
    print("KERNEL_OK")
</pallas_src>

<mosaic_0001>
module attributes {stable_mosaic.version = 11 : i64} {
  func.func @_beam_topk_kernel(%arg0: i32, %arg1: i32, %arg2: i32, %arg3: memref<1xi32, #tpu.memory_space<smem>>, %arg4: memref<8x32xbf16, #tpu.memory_space<vmem>>, %arg5: memref<32x128xbf16, #tpu.memory_space<vmem>>, %arg6: memref<8x1xf32, #tpu.memory_space<vmem>>, %arg7: memref<8x128xf32, #tpu.memory_space<vmem>>, %arg8: memref<8x128xi32, #tpu.memory_space<vmem>>, %arg9: memref<1x8x1xf32, #tpu.memory_space<vmem>>, %arg10: memref<8x1xf32, #tpu.memory_space<vmem>>, %arg11: memref<8x1xf32, #tpu.memory_space<vmem>>, %arg12: memref<8x128xf32, #tpu.memory_space<vmem>>, %arg13: memref<8x128xf32, #tpu.memory_space<vmem>>) attributes {dimension_semantics = [#tpu.dimension_semantics<parallel>, #tpu.dimension_semantics<parallel>, #tpu.dimension_semantics<arbitrary>], iteration_bounds = array<i64: 1, 1, 1>, scalar_prefetch = 1 : i64, scratch_operands = 4 : i64, tpu.core_type = #tpu.core_type<tc>, window_params = [{transform_indices = @transform_0, window_bounds = array<i64: 8, 32>}, {transform_indices = @transform_1, window_bounds = array<i64: 32, 128>}, {transform_indices = @transform_2, window_bounds = array<i64: 8, 1>}, {transform_indices = @transform_3, window_bounds = array<i64: 8, 128>}, {transform_indices = @transform_4, window_bounds = array<i64: 8, 128>}, {transform_indices = @transform_5, window_bounds = array<i64: 1, 8, 1>}]} {
    %c0_i32 = arith.constant 0 : i32
    %0 = arith.cmpi eq, %arg2, %c0_i32 : i32
    %1 = arith.extui %0 : i1 to i32
    %c0_i32_0 = arith.constant 0 : i32
    %2 = arith.cmpi ne, %1, %c0_i32_0 : i32
    scf.if %2 {
      %cst_58 = arith.constant -1.000000e+20 : f32
      %143 = vector.broadcast %cst_58 : f32 to vector<8x1xf32>
      %c0_59 = arith.constant 0 : index
      %c0_60 = arith.constant 0 : index
      %144 = vector.load %arg10[%c0_59, %c0_60] : memref<8x1xf32, #tpu.memory_space<vmem>>, vector<8x1xf32>
      tpu.vector_store %arg10[%c0_59, %c0_60], %143 {strides = array<i32>} : memref<8x1xf32, #tpu.memory_space<vmem>>, vector<8x1xf32>,
      %cst_61 = arith.constant 0.000000e+00 : f32
      %145 = vector.broadcast %cst_61 : f32 to vector<8x1xf32>
      %c0_62 = arith.constant 0 : index
      %c0_63 = arith.constant 0 : index
      %146 = vector.load %arg11[%c0_62, %c0_63] : memref<8x1xf32, #tpu.memory_space<vmem>>, vector<8x1xf32>
      tpu.vector_store %arg11[%c0_62, %c0_63], %145 {strides = array<i32>} : memref<8x1xf32, #tpu.memory_space<vmem>>, vector<8x1xf32>,
      %cst_64 = arith.constant 0xFF800000 : f32
      %147 = vector.broadcast %cst_64 : f32 to vector<8x128xf32>
      %c0_65 = arith.constant 0 : index
      %c0_66 = arith.constant 0 : index
      %148 = vector.load %arg12[%c0_65, %c0_66] : memref<8x128xf32, #tpu.memory_space<vmem>>, vector<8x128xf32>
      tpu.vector_store %arg12[%c0_65, %c0_66], %147 {strides = array<i32>} : memref<8x128xf32, #tpu.memory_space<vmem>>, vector<8x128xf32>,
      %cst_67 = arith.constant 1.000000e+09 : f32
      %149 = vector.broadcast %cst_67 : f32 to vector<8x128xf32>
      %c0_68 = arith.constant 0 : index
      %c0_69 = arith.constant 0 : index
      %150 = vector.load %arg13[%c0_68, %c0_69] : memref<8x128xf32, #tpu.memory_space<vmem>>, vector<8x128xf32>
      tpu.vector_store %arg13[%c0_68, %c0_69], %149 {strides = array<i32>} : memref<8x128xf32, #tpu.memory_space<vmem>>, vector<8x128xf32>,
    } else {
    }
    %c0 = arith.constant 0 : index
    %c0_1 = arith.constant 0 : index
    %3 = vector.load %arg4[%c0, %c0_1] : memref<8x32xbf16, #tpu.memory_space<vmem>>, vector<8x32xbf16>
    %c0_2 = arith.constant 0 : index
    %c0_3 = arith.constant 0 : index
    %4 = vector.load %arg5[%c0_2, %c0_3] : memref<32x128xbf16, #tpu.memory_space<vmem>>, vector<32x128xbf16>
    %cst = arith.constant dense<0.000000e+00> : vector<8x128xf32>
    %5 = tpu.matmul %3, %4, %cst {dimension_numbers = #tpu.dot_dimension_numbers<[1], [0], [0], [1], [0, 0, 1, 1], [], []>} : vector<8x32xbf16>, vector<32x128xbf16>, vector<8x128xf32> -> vector<8x128xf32>
    %c1_i32 = arith.constant 1 : i32
    %6 = arith.muli %arg1, %c1_i32 : i32
    %7 = arith.addi %6, %arg2 : i32
    %c128_i32 = arith.constant 128 : i32
    %8 = arith.muli %7, %c128_i32 : i32
    %9 = tpu.iota {dimensions = array<i32: 1>} : vector<8x128xi32>
    %10 = vector.broadcast %8 : i32 to vector<8x128xi32>
    %11 = arith.addi %10, %9 : vector<8x128xi32>
    %12 = arith.sitofp %11 : vector<8x128xi32> to vector<8x128xf32>
    %cst_4 = arith.constant dense<0xFF800000> : vector<8xf32>
    %13 = vector.multi_reduction <maximumf>, %5, %cst_4 [1] : vector<8x128xf32> to vector<8xf32>
    %14 = vector.shape_cast %13 : vector<8xf32> to vector<8x1xf32>
    %c0_5 = arith.constant 0 : index
    %c0_6 = arith.constant 0 : index
    %15 = vector.load %arg10[%c0_5, %c0_6] : memref<8x1xf32, #tpu.memory_space<vmem>>, vector<8x1xf32>
    %16 = arith.maximumf %15, %14 : vector<8x1xf32>
    %c0_7 = arith.constant 0 : index
    %c0_8 = arith.constant 0 : index
    %17 = vector.load %arg11[%c0_7, %c0_8] : memref<8x1xf32, #tpu.memory_space<vmem>>, vector<8x1xf32>
    %c0_9 = arith.constant 0 : index
    %c0_10 = arith.constant 0 : index
    %18 = vector.load %arg10[%c0_9, %c0_10] : memref<8x1xf32, #tpu.memory_space<vmem>>, vector<8x1xf32>
    %19 = arith.subf %18, %16 : vector<8x1xf32>
    %20 = math.exp %19 : vector<8x1xf32>
    %21 = arith.mulf %17, %20 : vector<8x1xf32>
    %22 = vector.broadcast %16 : vector<8x1xf32> to vector<8x128xf32>
    %23 = arith.subf %5, %22 : vector<8x128xf32>
    %24 = math.exp %23 : vector<8x128xf32>
    %cst_11 = arith.constant dense<0.000000e+00> : vector<8xf32>
    %25 = vector.multi_reduction <add>, %24, %cst_11 [1] : vector<8x128xf32> to vector<8xf32>
    %26 = vector.shape_cast %25 : vector<8xf32> to vector<8x1xf32>
    %27 = arith.addf %21, %26 : vector<8x1xf32>
    %c0_12 = arith.constant 0 : index
    %c0_13 = arith.constant 0 : index
    %28 = vector.load %arg11[%c0_12, %c0_13] : memref<8x1xf32, #tpu.memory_space<vmem>>, vector<8x1xf32>
    tpu.vector_store %arg11[%c0_12, %c0_13], %27 {strides = array<i32>} : memref<8x1xf32, #tpu.memory_space<vmem>>, vector<8x1xf32>,
    %c0_14 = arith.constant 0 : index
    %c0_15 = arith.constant 0 : index
    %29 = vector.load %arg10[%c0_14, %c0_15] : memref<8x1xf32, #tpu.memory_space<vmem>>, vector<8x1xf32>
    tpu.vector_store %arg10[%c0_14, %c0_15], %16 {strides = array<i32>} : memref<8x1xf32, #tpu.memory_space<vmem>>, vector<8x1xf32>,
    %c0_16 = arith.constant 0 : index
    %c0_17 = arith.constant 0 : index
    %30 = vector.load %arg6[%c0_16, %c0_17] : memref<8x1xf32, #tpu.memory_space<vmem>>, vector<8x1xf32>
    %31 = vector.broadcast %30 : vector<8x1xf32> to vector<8x128xf32>
    %32 = arith.addf %5, %31 : vector<8x128xf32>
    %c0_18 = arith.constant 0 : index
    %33 = memref.load %arg3[%c0_18] : memref<1xi32, #tpu.memory_space<smem>>
    %c0_i32_19 = arith.constant 0 : i32
    %34 = arith.cmpi sgt, %33, %c0_i32_19 : i32
    %cst_20 = arith.constant 2.000000e+00 : f32
    %35 = vector.broadcast %cst_20 : f32 to vector<8x128xf32>
    %36 = arith.cmpf oeq, %12, %35 : vector<8x128xf32>
    %37 = vector.broadcast %34 : i1 to vector<8x128xi1>
    %38 = arith.andi %37, %36 : vector<8x128xi1>
    %cst_21 = arith.constant -1.000000e+20 : f32
    %39 = vector.broadcast %cst_21 : f32 to vector<8x128xf32>
    %40 = arith.select %38, %39, %32 : vector<8x128xi1>, vector<8x128xf32>
    %c0_22 = arith.constant 0 : index
    %c0_23 = arith.constant 0 : index
    %41 = vector.load %arg12[%c0_22, %c0_23] : memref<8x128xf32, #tpu.memory_space<vmem>>, vector<8x128xf32>
    %42 = tpu.concatenate %41, %40 in 1 : vector<8x128xf32>, vector<8x128xf32> -> vector<8x256xf32>
    %c0_24 = arith.constant 0 : index
    %c0_25 = arith.constant 0 : index
    %43 = vector.load %arg13[%c0_24, %c0_25] : memref<8x128xf32, #tpu.memory_space<vmem>>, vector<8x128xf32>
    %44 = tpu.concatenate %43, %12 in 1 : vector<8x128xf32>, vector<8x128xf32> -> vector<8x256xf32>
    %45 = tpu.iota {dimensions = array<i32: 1>} : vector<8x128xi32>
    %cst_26 = arith.constant 0xFF800000 : f32
    %46 = vector.broadcast %cst_26 : f32 to vector<8x128xf32>
    %cst_27 = arith.constant 1.000000e+09 : f32
    %47 = vector.broadcast %cst_27 : f32 to vector<8x128xf32>
    %cst_28 = arith.constant dense<0xFF800000> : vector<8xf32>
    %48 = vector.multi_reduction <maximumf>, %42, %cst_28 [1] : vector<8x256xf32> to vector<8xf32>
    %49 = vector.shape_cast %48 : vector<8xf32> to vector<8x1xf32>
    %50 = vector.broadcast %49 : vector<8x1xf32> to vector<8x256xf32>
    %51 = arith.cmpf oge, %42, %50 : vector<8x256xf32>
    %cst_29 = arith.constant 1.000000e+09 : f32
    %52 = vector.broadcast %cst_29 : f32 to vector<8x256xf32>
    %53 = arith.select %51, %44, %52 : vector<8x256xi1>, vector<8x256xf32>
    %cst_30 = arith.constant dense<0x7F800000> : vector<8xf32>
    %54 = vector.multi_reduction <minimumf>, %53, %cst_30 [1] : vector<8x256xf32> to vector<8xf32>
    %55 = vector.shape_cast %54 : vector<8xf32> to vector<8x1xf32>
    %c0_i32_31 = arith.constant 0 : i32
    %56 = vector.broadcast %c0_i32_31 : i32 to vector<8x128xi32>
    %57 = arith.cmpi eq, %45, %56 : vector<8x128xi32>
    %58 = vector.shape_cast %49 : vector<8x1xf32> to vector<8x1xf32>
    %59 = vector.broadcast %58 : vector<8x1xf32> to vector<8x128xf32>
    %60 = arith.select %57, %59, %46 : vector<8x128xi1>, vector<8x128xf32>
    %c0_i32_32 = arith.constant 0 : i32
    %61 = vector.broadcast %c0_i32_32 : i32 to vector<8x128xi32>
    %62 = arith.cmpi eq, %45, %61 : vector<8x128xi32>
    %63 = vector.shape_cast %55 : vector<8x1xf32> to vector<8x1xf32>
    %64 = vector.broadcast %63 : vector<8x1xf32> to vector<8x128xf32>
    %65 = arith.select %62, %64, %47 : vector<8x128xi1>, vector<8x128xf32>
    %66 = vector.broadcast %55 : vector<8x1xf32> to vector<8x256xf32>
    %67 = arith.cmpf oeq, %44, %66 : vector<8x256xf32>
    %cst_33 = arith.constant 0xFF800000 : f32
    %68 = vector.broadcast %cst_33 : f32 to vector<8x256xf32>
    %69 = arith.select %67, %68, %42 : vector<8x256xi1>, vector<8x256xf32>
    %cst_34 = arith.constant 1.000000e+09 : f32
    %70 = vector.broadcast %cst_34 : f32 to vector<8x256xf32>
    %71 = arith.select %67, %70, %44 : vector<8x256xi1>, vector<8x256xf32>
    %cst_35 = arith.constant dense<0xFF800000> : vector<8xf32>
    %72 = vector.multi_reduction <maximumf>, %69, %cst_35 [1] : vector<8x256xf32> to vector<8xf32>
    %73 = vector.shape_cast %72 : vector<8xf32> to vector<8x1xf32>
    %74 = vector.broadcast %73 : vector<8x1xf32> to vector<8x256xf32>
    %75 = arith.cmpf oge, %69, %74 : vector<8x256xf32>
    %cst_36 = arith.constant 1.000000e+09 : f32
    %76 = vector.broadcast %cst_36 : f32 to vector<8x256xf32>
    %77 = arith.select %75, %71, %76 : vector<8x256xi1>, vector<8x256xf32>
    %cst_37 = arith.constant dense<0x7F800000> : vector<8xf32>
    %78 = vector.multi_reduction <minimumf>, %77, %cst_37 [1] : vector<8x256xf32> to vector<8xf32>
    %79 = vector.shape_cast %78 : vector<8xf32> to vector<8x1xf32>
    %c1_i32_38 = arith.constant 1 : i32
    %80 = vector.broadcast %c1_i32_38 : i32 to vector<8x128xi32>
    %81 = arith.cmpi eq, %45, %80 : vector<8x128xi32>
    %82 = vector.shape_cast %73 : vector<8x1xf32> to vector<8x1xf32>
    %83 = vector.broadcast %82 : vector<8x1xf32> to vector<8x128xf32>
    %84 = arith.select %81, %83, %60 : vector<8x128xi1>, vector<8x128xf32>
    %c1_i32_39 = arith.constant 1 : i32
    %85 = vector.broadcast %c1_i32_39 : i32 to vector<8x128xi32>
    %86 = arith.cmpi eq, %45, %85 : vector<8x128xi32>
    %87 = vector.shape_cast %79 : vector<8x1xf32> to vector<8x1xf32>
    %88 = vector.broadcast %87 : vector<8x1xf32> to vector<8x128xf32>
    %89 = arith.select %86, %88, %65 : vector<8x128xi1>, vector<8x128xf32>
    %90 = vector.broadcast %79 : vector<8x1xf32> to vector<8x256xf32>
    %91 = arith.cmpf oeq, %71, %90 : vector<8x256xf32>
    %cst_40 = arith.constant 0xFF800000 : f32
    %92 = vector.broadcast %cst_40 : f32 to vector<8x256xf32>
    %93 = arith.select %91, %92, %69 : vector<8x256xi1>, vector<8x256xf32>
    %cst_41 = arith.constant 1.000000e+09 : f32
    %94 = vector.broadcast %cst_41 : f32 to vector<8x256xf32>
    %95 = arith.select %91, %94, %71 : vector<8x256xi1>, vector<8x256xf32>
    %cst_42 = arith.constant dense<0xFF800000> : vector<8xf32>
    %96 = vector.multi_reduction <maximumf>, %93, %cst_42 [1] : vector<8x256xf32> to vector<8xf32>
    %97 = vector.shape_cast %96 : vector<8xf32> to vector<8x1xf32>
    %98 = vector.broadcast %97 : vector<8x1xf32> to vector<8x256xf32>
    %99 = arith.cmpf oge, %93, %98 : vector<8x256xf32>
    %cst_43 = arith.constant 1.000000e+09 : f32
    %100 = vector.broadcast %cst_43 : f32 to vector<8x256xf32>
    %101 = arith.select %99, %95, %100 : vector<8x256xi1>, vector<8x256xf32>
    %cst_44 = arith.constant dense<0x7F800000> : vector<8xf32>
    %102 = vector.multi_reduction <minimumf>, %101, %cst_44 [1] : vector<8x256xf32> to vector<8xf32>
    %103 = vector.shape_cast %102 : vector<8xf32> to vector<8x1xf32>
    %c2_i32 = arith.constant 2 : i32
    %104 = vector.broadcast %c2_i32 : i32 to vector<8x128xi32>
    %105 = arith.cmpi eq, %45, %104 : vector<8x128xi32>
    %106 = vector.shape_cast %97 : vector<8x1xf32> to vector<8x1xf32>
    %107 = vector.broadcast %106 : vector<8x1xf32> to vector<8x128xf32>
    %108 = arith.select %105, %107, %84 : vector<8x128xi1>, vector<8x128xf32>
    %c2_i32_45 = arith.constant 2 : i32
    %109 = vector.broadcast %c2_i32_45 : i32 to vector<8x128xi32>
    %110 = arith.cmpi eq, %45, %109 : vector<8x128xi32>
    %111 = vector.shape_cast %103 : vector<8x1xf32> to vector<8x1xf32>
    %112 = vector.broadcast %111 : vector<8x1xf32> to vector<8x128xf32>
    %113 = arith.select %110, %112, %89 : vector<8x128xi1>, vector<8x128xf32>
    %114 = vector.broadcast %103 : vector<8x1xf32> to vector<8x256xf32>
    %115 = arith.cmpf oeq, %95, %114 : vector<8x256xf32>
    %cst_46 = arith.constant 0xFF800000 : f32
    %116 = vector.broadcast %cst_46 : f32 to vector<8x256xf32>
    %117 = arith.select %115, %116, %93 : vector<8x256xi1>, vector<8x256xf32>
    %cst_47 = arith.constant 1.000000e+09 : f32
    %118 = vector.broadcast %cst_47 : f32 to vector<8x256xf32>
    %119 = arith.select %115, %118, %95 : vector<8x256xi1>, vector<8x256xf32>
    %cst_48 = arith.constant dense<0xFF800000> : vector<8xf32>
    %120 = vector.multi_reduction <maximumf>, %117, %cst_48 [1] : vector<8x256xf32> to vector<8xf32>
    %121 = vector.shape_cast %120 : vector<8xf32> to vector<8x1xf32>
    %122 = vector.broadcast %121 : vector<8x1xf32> to vector<8x256xf32>
    %123 = arith.cmpf oge, %117, %122 : vector<8x256xf32>
    %cst_49 = arith.constant 1.000000e+09 : f32
    %124 = vector.broadcast %cst_49 : f32 to vector<8x256xf32>
    %125 = arith.select %123, %119, %124 : vector<8x256xi1>, vector<8x256xf32>
    %cst_50 = arith.constant dense<0x7F800000> : vector<8xf32>
    %126 = vector.multi_reduction <minimumf>, %125, %cst_50 [1] : vector<8x256xf32> to vector<8xf32>
    %127 = vector.shape_cast %126 : vector<8xf32> to vector<8x1xf32>
    %c3_i32 = arith.constant 3 : i32
    %128 = vector.broadcast %c3_i32 : i32 to vector<8x128xi32>
    %129 = arith.cmpi eq, %45, %128 : vector<8x128xi32>
    %130 = vector.shape_cast %121 : vector<8x1xf32> to vector<8x1xf32>
    %131 = vector.broadcast %130 : vector<8x1xf32> to vector<8x128xf32>
    %132 = arith.select %129, %131, %108 : vector<8x128xi1>, vector<8x128xf32>
    %c3_i32_51 = arith.constant 3 : i32
    %133 = vector.broadcast %c3_i32_51 : i32 to vector<8x128xi32>
    %134 = arith.cmpi eq, %45, %133 : vector<8x128xi32>
    %135 = vector.shape_cast %127 : vector<8x1xf32> to vector<8x1xf32>
    %136 = vector.broadcast %135 : vector<8x1xf32> to vector<8x128xf32>
    %137 = arith.select %134, %136, %113 : vector<8x128xi1>, vector<8x128xf32>
    %c0_52 = arith.constant 0 : index
    %c0_53 = arith.constant 0 : index
    %138 = vector.load %arg12[%c0_52, %c0_53] : memref<8x128xf32, #tpu.memory_space<vmem>>, vector<8x128xf32>
    tpu.vector_store %arg12[%c0_52, %c0_53], %132 {strides = array<i32>} : memref<8x128xf32, #tpu.memory_space<vmem>>, vector<8x128xf32>,
    %c0_54 = arith.constant 0 : index
    %c0_55 = arith.constant 0 : index
    %139 = vector.load %arg13[%c0_54, %c0_55] : memref<8x128xf32, #tpu.memory_space<vmem>>, vector<8x128xf32>
    tpu.vector_store %arg13[%c0_54, %c0_55], %137 {strides = array<i32>} : memref<8x128xf32, #tpu.memory_space<vmem>>, vector<8x128xf32>,
    %c0_i32_56 = arith.constant 0 : i32
    %140 = arith.cmpi eq, %arg2, %c0_i32_56 : i32
    %141 = arith.extui %140 : i1 to i32
    %c0_i32_57 = arith.constant 0 : i32
    %142 = arith.cmpi ne, %141, %c0_i32_57 : i32
    scf.if %142 {
      %c0_58 = arith.constant 0 : index
      %c0_59 = arith.constant 0 : index
      %143 = vector.load %arg12[%c0_58, %c0_59] : memref<8x128xf32, #tpu.memory_space<vmem>>, vector<8x128xf32>
      %c0_60 = arith.constant 0 : index
      %c0_61 = arith.constant 0 : index
      %144 = vector.load %arg7[%c0_60, %c0_61] : memref<8x128xf32, #tpu.memory_space<vmem>>, vector<8x128xf32>
      tpu.vector_store %arg7[%c0_60, %c0_61], %143 {strides = array<i32>} : memref<8x128xf32, #tpu.memory_space<vmem>>, vector<8x128xf32>,
      %c0_62 = arith.constant 0 : index
      %c0_63 = arith.constant 0 : index
      %145 = vector.load %arg13[%c0_62, %c0_63] : memref<8x128xf32, #tpu.memory_space<vmem>>, vector<8x128xf32>
      %146 = arith.fptosi %145 : vector<8x128xf32> to vector<8x128xi32>
      %c0_64 = arith.constant 0 : index
      %c0_65 = arith.constant 0 : index
      %147 = vector.load %arg8[%c0_64, %c0_65] : memref<8x128xi32, #tpu.memory_space<vmem>>, vector<8x128xi32>
      tpu.vector_store %arg8[%c0_64, %c0_65], %146 {strides = array<i32>} : memref<8x128xi32, #tpu.memory_space<vmem>>, vector<8x128xi32>,
      %c0_66 = arith.constant 0 : index
      %c0_67 = arith.constant 0 : index
      %148 = vector.load %arg10[%c0_66, %c0_67] : memref<8x1xf32, #tpu.memory_space<vmem>>, vector<8x1xf32>
      %c0_68 = arith.constant 0 : index
      %c0_69 = arith.constant 0 : index
      %149 = vector.load %arg11[%c0_68, %c0_69] : memref<8x1xf32, #tpu.memory_space<vmem>>, vector<8x1xf32>
      %150 = math.log %149 : vector<8x1xf32>
      %151 = arith.addf %148, %150 : vector<8x1xf32>
      %c0_70 = arith.constant 0 : index
      %c0_71 = arith.constant 0 : index
      %c0_72 = arith.constant 0 : index
      %152 = vector.load %arg9[%c0_70, %c0_71, %c0_72] : memref<1x8x1xf32, #tpu.memory_space<vmem>>, vector<1x8x1xf32>
      %153 = vector.shape_cast %152 : vector<1x8x1xf32> to vector<8x1xf32>
      %154 = vector.shape_cast %151 : vector<8x1xf32> to vector<1x8x1xf32>
      tpu.vector_store %arg9[%c0_70, %c0_71, %c0_72], %154 {strides = array<i32>} : memref<1x8x1xf32, #tpu.memory_space<vmem>>, vector<1x8x1xf32>,
    } else {
    }
    return
  }
  func.func @transform_0(%arg0: i32, %arg1: i32, %arg2: i32, %arg3: memref<1xi32, #tpu.memory_space<smem>>) -> (i32, i32) {
    %c0_i32 = arith.constant 0 : i32
    %c0_i32_0 = arith.constant 0 : i32
    return %arg0, %c0_i32 : i32, i32
  }
  func.func @transform_1(%arg0: i32, %arg1: i32, %arg2: i32, %arg3: memref<1xi32, #tpu.memory_space<smem>>) -> (i32, i32) {
    %c1_i32 = arith.constant 1 : i32
    %0 = arith.muli %arg1, %c1_i32 : i32
    %1 = arith.addi %0, %arg2 : i32
    %c0_i32 = arith.constant 0 : i32
    %c0_i32_0 = arith.constant 0 : i32
    return %c0_i32, %1 : i32, i32
  }
  func.func @transform_2(%arg0: i32, %arg1: i32, %arg2: i32, %arg3: memref<1xi32, #tpu.memory_space<smem>>) -> (i32, i32) {
    %c0_i32 = arith.constant 0 : i32
    %c0_i32_0 = arith.constant 0 : i32
    return %arg0, %c0_i32 : i32, i32
  }
  func.func @transform_3(%arg0: i32, %arg1: i32, %arg2: i32, %arg3: memref<1xi32, #tpu.memory_space<smem>>) -> (i32, i32) {
    %c0_i32 = arith.constant 0 : i32
    return %arg0, %arg1 : i32, i32
  }
  func.func @transform_4(%arg0: i32, %arg1: i32, %arg2: i32, %arg3: memref<1xi32, #tpu.memory_space<smem>>) -> (i32, i32) {
    %c0_i32 = arith.constant 0 : i32
    return %arg0, %arg1 : i32, i32
  }
  func.func @transform_5(%arg0: i32, %arg1: i32, %arg2: i32, %arg3: memref<1xi32, #tpu.memory_space<smem>>) -> (i32, i32, i32) {
    %c0_i32 = arith.constant 0 : i32
    %c0_i32_0 = arith.constant 0 : i32
    return %arg1, %arg0, %c0_i32 : i32, i32, i32
  }
}

</mosaic_0001>

<llo_original>
// kernel: _device_step.1
$region0: #{_device_step.1}
  #allocation0 [shape = 'u32[]', space=smem, size = 0x4, offset = 0x4, fixed_abs, tag = 'smem constant byte address 0x4 - core index']
  #allocation1 [shape = 'u32[72,128]{1,0:T(1,128)}', space=vmem, size = 0x9000, scoped, tag = 'internal scratch']
  #allocation2 [shape = 'f32[8,1]{1,0:T(8,128)}', space=vmem, size = 0x1000, scoped, tag = 'scratch operand']
  #allocation3 [shape = 'f32[8,1]{1,0:T(8,128)}', space=vmem, size = 0x1000, scoped, tag = 'scratch operand']
  #allocation4 [shape = 'f32[8,128]{1,0:T(8,128)}', space=vmem, size = 0x1000, scoped, tag = 'scratch operand']
  #allocation5 [shape = 'f32[8,128]{1,0:T(8,128)}', space=vmem, size = 0x1000, scoped, tag = 'scratch operand']
  #allocation6 [shape = 's32[1]{0}', space=sflag, size = 0x4, scoped, tag = 'scoped memory for _device_step.1']
  #allocation7 [shape = 's32[1]{0:T(128)S(6)}', space=smem, size = 0x200, scoped, tag = 'prefetched SMEM operand 0']
  %s0 = inlined_call_operand.<no memory space> [shape: s32[1], index: 0, kind: input, shape index: {}]
  %s1 = inlined_call_operand.vmem [shape: bf16[8,32], index: 1, kind: input, shape index: {}]
  %s2 = inlined_call_operand.vmem [shape: bf16[32,128], index: 2, kind: input, shape index: {}]
  %s3 = inlined_call_operand.vmem [shape: f32[8,1], index: 3, kind: input, shape index: {}]
  %s4 = inlined_call_operand.vmem [shape: f32[8,128], index: 4, kind: output, shape index: {0}]
  %s5 = inlined_call_operand.vmem [shape: s32[8,128], index: 5, kind: output, shape index: {1}]
  %s6 = inlined_call_operand.vmem [shape: f32[1,8,1], index: 6, kind: output, shape index: {2}]
  %7 = xla_tuple %s4, %s5, %s6
  %s8 = sld [smem:[#allocation0]]
  $region46: #{_device_step.1} parent=0
    _
  %s10 = ssub.s32 1, %s8
  %s11 = scalar_select 0, %s10, %s8
  %12 = sst [smem:[#allocation7]] %s0
  // Predicated region
  $region2: #{_device_step.1} parent=0 // pred_check
    _
  $region3: #{_device_step.1} parent=0 // pred_check_branch
    %14 = sbr.rel (0) target = $region5
  $region4: #{_device_step.1} parent=0 // pred_region
    _
  $region5: #{_device_step.1} parent=0 // pred_fallthru
    _
  // Predicated region
  $region6: #{_device_step.1} parent=0 // pred_check
    _
  $region7: #{_device_step.1} parent=0 // pred_check_branch
    %16 = sbr.rel (0) target = $region9
  $region8: #{_device_step.1} parent=0 // pred_region
    %s17 = sadd.s32 0, 0
    %p18 = scmp.lt.s32.totalorder %s17, 0
    %s19 = scalar_select %p18, %s17, 0
    %s20 = smul.addr %s19, 4
    %s21 = scalar_lea.vmem %s2, %s20
    %s22 = sadd.s32 0, 0
  $region9: #{_device_step.1} parent=0 // pred_fallthru
    _
  // Predicated region
  $region10: #{_device_step.1} parent=0 // pred_check
    _
  $region11: #{_device_step.1} parent=0 // pred_check_branch
    %24 = sbr.rel (0) target = $region13
  $region12: #{_device_step.1} parent=0 // pred_region
    _
  $region13: #{_device_step.1} parent=0 // pred_fallthru
    _
  %s25 = sadd.s32 0, 0
  %p26 = scmp.lt.s32.totalorder %s25, 0
  %s27 = scalar_select %p26, %s25, 0
  %s28 = smul.addr %s27, 4
  %s29 = scalar_lea.vmem %s2, %s28
  %s30 = sadd.s32 0, 0
  %p31 = scmp.lt.s32.totalorder %s30, 0
  %s32 = scalar_select %p31, %s30, 0
  %s33 = smul.addr %s32, 4
  %s34 = scalar_lea.vmem %s2, %s33
  %s35 = sadd.s32 0, 0
  %p37 = scmp.eq.s32.totalorder 0, 0
  // Predicated region
  $region14: #{_device_step.1} parent=0 // pred_check
    %p38 = pneg %p37
  $region15: #{_device_step.1} parent=0 // pred_check_branch
    %40 = sbr.rel (%p38) target = $region17
  $region16: #{_device_step.1} parent=0 // pred_region
    %vm41 = vcmask 7168
    %42 = vst.msk [vmem:[#allocation2] sm:$0xff] %vm41, -1e+20
    %43 = vst.msk [vmem:[#allocation3] sm:$0xff] %vm41, 0.0
    %44 = vst [vmem:[#allocation4] sm:$0xff] -inf
    %45 = vst [vmem:[#allocation5] sm:$0xff] 1e+09
  $region17: #{_device_step.1} parent=0 // pred_fallthru
    _
  %v46 = vld [vmem:[%s1] sm:$0xf]
  %v47 = vld [vmem:[%s34] sm:$0xf]
  %v48 = vld [vmem:[%s34 + $0x4] sm:$0xf]
  %v49 = vld [vmem:[%s34 + $0x8] sm:$0xf]
  %v50 = vld [vmem:[%s34 + $0xc] sm:$0xf]
  %v55 = vunpack.c.l.b16 %v47
  %v56 = vunpack.c.l.b16 %v48
  %v57 = vunpack.c.l.b16 %v49
  %v58 = vunpack.c.l.b16 %v50
  %v59 = vpack.c.b16 %v56, %v55
  %v60 = vpack.c.b16 %v58, %v57
  %vm63 = vcmask 261120
  %v65 = vsel %vm63, %v46, 0
  %67 = vmatpush.bf16.msra.mxu0 0
  %68 = vmatpush.bf16.msra.mxu0 0
  %69 = vmatpush.bf16.msra.mxu0 0
  %70 = vmatpush.bf16.msra.mxu0 0
  %71 = vmatpush.bf16.msra.mxu0 0
  %72 = vmatpush.bf16.msra.mxu0 0
  %73 = vmatpush.bf16.msra.mxu0 %v60
  %74 = vmatpush.bf16.msra.mxu0 %v59
  %75 = vmatmul.bf16.gmra.mxu0 %v65
  %v76 = vpop.f32.mrf.mxu0
  %v77 = vadd.f32 0.0, %v76
  %v78 = vpop.f32.mrf.mxu0
  %79 = vdwg.mxu0
  %s80 = sadd.s32 0, 0
  %s81 = smul.u32 %s80, 128
  %v82 = vlaneseq
  %v83 = vand.u32 %v82, 127
  %v84 = vstv %s81
  %v85 = vadd.s32 %v84, %v83
  %v86 = vcvt.s32.f32 %v85
  %87 = vmax.xlane.f32.xlu0 %v77
  %v88 = vpop.xlane.xlu0 %87
  %v89 = vld [vmem:[#allocation2] sm:$0xff]
  %v90 = vmax.f32 %v89, %v88
  %v91 = vld [vmem:[#allocation3] sm:$0xff]
  %v92 = vsub.f32 %v89, %v90
  %v93 = vmul.f32 %v92, 1.442695
  %v94 = vpow.pop %v93
  %v95 = vmul.f32 %v91, %v94
  %97 = vset.pattern.permute.xlu0 0
  %98 = vperm.xlu0 %97, %v90
  %v99 = vpop.permute.xlu0 %98
  %v101 = vsub.f32 %v77, %v99
  %v102 = vmul.f32 %v101, 1.442695
  %v103 = vpow.pop %v102
  %104 = vadd.xlane.f32.xlu0 %v103
  %v105 = vpop.xlane.xlu0 %104
  %v106 = vadd.f32 %v95, %v105
  %vm107 = vcmask 7168
  %108 = vst.msk [vmem:[#allocation3] sm:$0xff] %vm107, %v106
  %109 = vst.msk [vmem:[#allocation2] sm:$0xff] %vm107, %v90
  %v110 = vld [vmem:[%s3] sm:$0xff]
  %112 = vset.pattern.permute.xlu0 0
  %113 = vperm.xlu0 %112, %v110
  %v114 = vpop.permute.xlu0 %113
  %v116 = vadd.f32 %v77, %v114
  %s117 = sld [smem:[#allocation7]]
  %p118 = scmp.gt.s32.totalorder %s117, 0
  %vm119 = vcmp.eq.f32.partialorder %v86, 2.0
  %s120 = scalar_select %p118, 1, 0
  %v121 = vstv %s120
  %vm122 = vcmp.eq.s32.totalorder %v121, 1
  %vm123 = vmand %vm122, %vm119
  %v124 = vsel %vm123, -1e+20, %v116
  %v125 = vld [vmem:[#allocation4] sm:$0xff]
  %v126 = vld [vmem:[#allocation5] sm:$0xff]
  %v127 = vmax.f32 %v125, %v124
  %128 = vmax.xlane.f32.xlu0 %v127
  %v129 = vpop.xlane.xlu0 %128
  %vm130 = vcmp.ge.f32.partialorder %v125, %v129
  %vm131 = vcmp.ge.f32.partialorder %v124, %v129
  %v132 = vsel %vm130, %v126, 1e+09
  %v133 = vsel %vm131, %v86, 1e+09
  %v134 = vmin.f32 %v132, %v133
  %135 = vmin.xlane.f32.xlu0 %v134
  %v136 = vpop.xlane.xlu0 %135
  %vm137 = vcmp.eq.s32.totalorder %v83, 0
  %v138 = vsel %vm137, %v129, -inf
  %v139 = vsel %vm137, %v136, 1e+09
  %vm140 = vcmp.eq.f32.partialorder %v126, %v136
  %vm141 = vcmp.eq.f32.partialorder %v86, %v136
  %v142 = vsel %vm140, -inf, %v125
  %v143 = vsel %vm141, -inf, %v124
  %v144 = vsel %vm140, 1e+09, %v126
  %v145 = vsel %vm141, 1e+09, %v86
  %v146 = vmax.f32 %v142, %v143
  %147 = vmax.xlane.f32.xlu0 %v146
  %v148 = vpop.xlane.xlu0 %147
  %vm149 = vcmp.ge.f32.partialorder %v142, %v148
  %vm150 = vcmp.ge.f32.partialorder %v143, %v148
  %v151 = vsel %vm149, %v144, 1e+09
  %v152 = vsel %vm150, %v145, 1e+09
  %v153 = vmin.f32 %v151, %v152
  %154 = vmin.xlane.f32.xlu0 %v153
  %v155 = vpop.xlane.xlu0 %154
  %vm156 = vcmp.eq.s32.totalorder %v83, 1
  %v157 = vsel %vm156, %v148, %v138
  %v158 = vsel %vm156, %v155, %v139
  %vm159 = vcmp.eq.f32.partialorder %v144, %v155
  %vm160 = vcmp.eq.f32.partialorder %v145, %v155
  %v161 = vsel %vm159, -inf, %v142
  %v162 = vsel %vm160, -inf, %v143
  %v163 = vsel %vm159, 1e+09, %v144
  %v164 = vsel %vm160, 1e+09, %v145
  %v165 = vmax.f32 %v161, %v162
  %166 = vmax.xlane.f32.xlu0 %v165
  %v167 = vpop.xlane.xlu0 %166
  %vm168 = vcmp.ge.f32.partialorder %v161, %v167
  %vm169 = vcmp.ge.f32.partialorder %v162, %v167
  %v170 = vsel %vm168, %v163, 1e+09
  %v171 = vsel %vm169, %v164, 1e+09
  %v172 = vmin.f32 %v170, %v171
  %173 = vmin.xlane.f32.xlu0 %v172
  %v174 = vpop.xlane.xlu0 %173
  %vm175 = vcmp.eq.s32.totalorder %v83, 2
  %v176 = vsel %vm175, %v167, %v157
  %v177 = vsel %vm175, %v174, %v158
  %vm178 = vcmp.eq.f32.partialorder %v163, %v174
  %vm179 = vcmp.eq.f32.partialorder %v164, %v174
  %v180 = vsel %vm178, -inf, %v161
  %v181 = vsel %vm179, -inf, %v162
  %v182 = vsel %vm178, 1e+09, %v163
  %v183 = vsel %vm179, 1e+09, %v164
  %v184 = vmax.f32 %v180, %v181
  %185 = vmax.xlane.f32.xlu0 %v184
  %v186 = vpop.xlane.xlu0 %185
  %vm187 = vcmp.ge.f32.partialorder %v180, %v186
  %vm188 = vcmp.ge.f32.partialorder %v181, %v186
  %v189 = vsel %vm187, %v182, 1e+09
  %v190 = vsel %vm188, %v183, 1e+09
  %v191 = vmin.f32 %v189, %v190
  %192 = vmin.xlane.f32.xlu0 %v191
  %v193 = vpop.xlane.xlu0 %192
  %vm194 = vcmp.eq.s32.totalorder %v83, 3
  %v195 = vsel %vm194, %v186, %v176
  %v196 = vsel %vm194, %v193, %v177
  %197 = vst [vmem:[#allocation4] sm:$0xff] %v195
  %198 = vst [vmem:[#allocation5] sm:$0xff] %v196
  // Predicated region
  $region18: #{_device_step.1} parent=0 // pred_check
    %p199 = pneg %p37
  $region19: #{_device_step.1} parent=0 // pred_check_branch
    %201 = sbr.rel (%p199) target = $region21
  $region20: #{_device_step.1} parent=0 // pred_region
    %v202 = vld [vmem:[#allocation4] sm:$0xff]
    %203 = vst [vmem:[%s4] sm:$0xff] %v202
    %v204 = vld [vmem:[#allocation5] sm:$0xff]
    %v205 = vcvt.f32.s32.to.zero.pseudo %v204
    %206 = vst [vmem:[%s5] sm:$0xff] %v205
    %v207 = vld [vmem:[#allocation2] sm:$0xff]
    %v208 = vld [vmem:[#allocation3] sm:$0xff]
    %v209 = vlog2.pop %v208
    %v210 = vmul.f32 %v209, 0.6931472
    %v211 = vadd.f32 %v207, %v210
    %212 = vst.msk [vmem:[%s6] sm:$0xff] %vm107, %v211
  $region21: #{_device_step.1} parent=0 // pred_fallthru
    _
  // Predicated region
  $region22: #{_device_step.1} parent=0 // pred_check
    _
  $region23: #{_device_step.1} parent=0 // pred_check_branch
    %214 = sbr.rel (0) target = $region25
  $region24: #{_device_step.1} parent=0 // pred_region
    _
  $region25: #{_device_step.1} parent=0 // pred_fallthru
    _
  // Predicated region
  $region26: #{_device_step.1} parent=0 // pred_check
    _
  $region27: #{_device_step.1} parent=0 // pred_check_branch
    %216 = sbr.rel (0) target = $region29
  $region28: #{_device_step.1} parent=0 // pred_region
    _
  $region29: #{_device_step.1} parent=0 // pred_fallthru
    _
  // Predicated region
  $region30: #{_device_step.1} parent=0 // pred_check
    _
  $region31: #{_device_step.1} parent=0 // pred_check_branch
    %218 = sbr.rel (0) target = $region33
  $region32: #{_device_step.1} parent=0 // pred_region
    _
  $region33: #{_device_step.1} parent=0 // pred_fallthru
    _
  // Predicated region
  $region34: #{_device_step.1} parent=0 // pred_check
    _
  $region35: #{_device_step.1} parent=0 // pred_check_branch
    %220 = sbr.rel (0) target = $region37
  $region36: #{_device_step.1} parent=0 // pred_region
    _
  $region37: #{_device_step.1} parent=0 // pred_fallthru
    _
  // Predicated region
  $region38: #{_device_step.1} parent=0 // pred_check
    _
  $region39: #{_device_step.1} parent=0 // pred_check_branch
    %222 = sbr.rel (0) target = $region41
  $region40: #{_device_step.1} parent=0 // pred_region
    _
  $region41: #{_device_step.1} parent=0 // pred_fallthru
    _
  // Predicated region
  $region42: #{_device_step.1} parent=0 // pred_check
    _
  $region43: #{_device_step.1} parent=0 // pred_check_branch
    %224 = sbr.rel (0) target = $region45
  $region44: #{_device_step.1} parent=0 // pred_region
    _
  $region45: #{_device_step.1} parent=0 // pred_fallthru
    _

</llo_original>
